<compile_context>
chip_gen: v5e
topology: v5e:2x2
jax: 0.10.0
libtpu: 0.0.40
codegen_flags: <defaults>
</compile_context>

<pallas_src>
import numpy as np
import jax
import jax.numpy as jnp
from jax.experimental import pallas as pl
from jax.experimental.pallas import tpu as pltpu


def _ring_step_kernel(state_ref, wact_ref, out_ref):
    # state_ref: (R, I)  -- all ring slices for this batch element b
    # wact_ref : (I, K)  -- activated weight slab for this b (j already contracted)
    # out_ref  : (R, K)
    out_ref[...] = jnp.dot(
        state_ref[...], wact_ref[...], preferred_element_type=jnp.float32
    ).astype(out_ref.dtype)


@jax.jit
def kernel_shared_tensor_ring(inp, state, weight):
    """Forward of KernelSharedTensorRing.

    inp    : (B, M)      float32
    state  : (R, B, I)   float32
    weight : (I, M, K)   float32
    returns  (R, B, K)   float32
    """
    I, M, K = weight.shape
    B, M_in = inp.shape
    R, B_s, I_s = state.shape
    assert M_in == M and B_s == B and I_s == I, "shape mismatch"

    # ---- Stage 1 (contract j), shared across the ring axis r. ----
    # One XLA (B,M)@(M,I*K) dot + relayout, paid once per forward (per the
    # perf review: do NOT recompute it per grid tile / hold w2 as a broadcast
    # VMEM block inside the kernel).
    w_act = jnp.einsum('bj,ijk->bik', inp, weight)          # (B, I, K)

    # b-major view of the state so each grid step gets a contiguous (R, I) tile.
    state_bm = jnp.transpose(state, (1, 0, 2))              # (B, R, I)

    # ---- Stage 2 (contract i) on the MXU, one exact-flop dot per batch b. ----
    out_bm = pl.pallas_call(
        _ring_step_kernel,
        out_shape=jax.ShapeDtypeStruct((B, R, K), jnp.float32),
        grid=(B,),
        in_specs=[
            # per-b (R, I) state tile; leading batch dim squeezed away
            pl.BlockSpec((pl.Squeezed(), R, I), lambda b: (b, 0, 0)),
            # per-b (I, K) activated-weight tile
            pl.BlockSpec((pl.Squeezed(), I, K), lambda b: (b, 0, 0)),
        ],
        out_specs=pl.BlockSpec((pl.Squeezed(), R, K), lambda b: (b, 0, 0)),
        compiler_params=pltpu.CompilerParams(
            dimension_semantics=("parallel",),      # megacore split over b (v7x)
            vmem_limit_bytes=32 * 1024 * 1024,      # raise v5e's 16 MiB default
        ),
    )(state_bm, w_act)                                      # (B, R, K)

    # Back to the module's (R, B, K) layout (tiny XLA transpose).
    return jnp.transpose(out_bm, (1, 0, 2))


def _xavier_uniform(key, shape, gain):
    # Replicates torch.nn.init.xavier_uniform_ for a 3D tensor:
    # fan_in = shape[1] * prod(shape[2:]), fan_out = shape[0] * prod(shape[2:])
    receptive = int(np.prod(shape[2:])) if len(shape) > 2 else 1
    fan_in = shape[1] * receptive
    fan_out = shape[0] * receptive
    bound = gain * float(np.sqrt(6.0 / (fan_in + fan_out)))
    return jax.random.uniform(key, shape, jnp.float32, -bound, bound)


if __name__ == "__main__":
    # Module hyper-params (small, consistent with the forward):
    first_rank, m, second_rank = 8, 32, 8    # I, J(m), K
    ring_rank, batch = 8, 4                  # R (state leading dim), B
    init_value = 1.0

    key = jax.random.PRNGKey(0)
    kw, ki, ks = jax.random.split(key, 3)
    weight = _xavier_uniform(kw, (first_rank, m, second_rank), init_value)
    inp = jax.random.normal(ki, (batch, m), jnp.float32)
    state = jax.random.normal(ks, (ring_rank, batch, first_rank), jnp.float32)

    out = jax.block_until_ready(kernel_shared_tensor_ring(inp, state, weight))

    # Pure-JAX reference of the chained einsums from the PyTorch forward.
    ref = jnp.einsum('ijk,bj,rbi->rbk', weight, inp, state)
    assert out.shape == (ring_rank, batch, second_rank)
    np.testing.assert_allclose(np.asarray(out), np.asarray(ref), rtol=2e-4, atol=1e-5)
    print("KERNEL_OK")
</pallas_src>

<mosaic_0001>
module attributes {stable_mosaic.version = 11 : i64} {
  func.func @_ring_step_kernel(%arg0: i32, %arg1: memref<1x8x8xf32, #tpu.memory_space<vmem>>, %arg2: memref<1x8x8xf32, #tpu.memory_space<vmem>>, %arg3: memref<1x8x8xf32, #tpu.memory_space<vmem>>) attributes {dimension_semantics = [#tpu.dimension_semantics<parallel>], iteration_bounds = array<i64: 4>, scalar_prefetch = 0 : i64, scratch_operands = 0 : i64, tpu.core_type = #tpu.core_type<tc>, window_params = [{transform_indices = @transform_0, window_bounds = array<i64: 1, 8, 8>}, {transform_indices = @transform_1, window_bounds = array<i64: 1, 8, 8>}, {transform_indices = @transform_2, window_bounds = array<i64: 1, 8, 8>}]} {
    %c0 = arith.constant 0 : index
    %c0_0 = arith.constant 0 : index
    %c0_1 = arith.constant 0 : index
    %0 = vector.load %arg1[%c0, %c0_0, %c0_1] : memref<1x8x8xf32, #tpu.memory_space<vmem>>, vector<1x8x8xf32>
    %1 = vector.shape_cast %0 : vector<1x8x8xf32> to vector<8x8xf32>
    %c0_2 = arith.constant 0 : index
    %c0_3 = arith.constant 0 : index
    %c0_4 = arith.constant 0 : index
    %2 = vector.load %arg2[%c0_2, %c0_3, %c0_4] : memref<1x8x8xf32, #tpu.memory_space<vmem>>, vector<1x8x8xf32>
    %3 = vector.shape_cast %2 : vector<1x8x8xf32> to vector<8x8xf32>
    %cst = arith.constant dense<0.000000e+00> : vector<8x8xf32>
    %4 = tpu.matmul %1, %3, %cst {dimension_numbers = #tpu.dot_dimension_numbers<[1], [0], [0], [1], [0, 0, 1, 1], [], []>} : vector<8x8xf32>, vector<8x8xf32>, vector<8x8xf32> -> vector<8x8xf32>
    %c0_5 = arith.constant 0 : index
    %c0_6 = arith.constant 0 : index
    %c0_7 = arith.constant 0 : index
    %5 = vector.load %arg3[%c0_5, %c0_6, %c0_7] : memref<1x8x8xf32, #tpu.memory_space<vmem>>, vector<1x8x8xf32>
    %6 = vector.shape_cast %5 : vector<1x8x8xf32> to vector<8x8xf32>
    %7 = vector.shape_cast %4 : vector<8x8xf32> to vector<1x8x8xf32>
    tpu.vector_store %arg3[%c0_5, %c0_6, %c0_7], %7 {strides = array<i32>} : memref<1x8x8xf32, #tpu.memory_space<vmem>>, vector<1x8x8xf32>,
    return
  }
  func.func @transform_0(%arg0: i32) -> (i32, i32, i32) {
    %c0_i32 = arith.constant 0 : i32
    %c0_i32_0 = arith.constant 0 : i32
    %c0_i32_1 = arith.constant 0 : i32
    return %arg0, %c0_i32, %c0_i32_0 : i32, i32, i32
  }
  func.func @transform_1(%arg0: i32) -> (i32, i32, i32) {
    %c0_i32 = arith.constant 0 : i32
    %c0_i32_0 = arith.constant 0 : i32
    %c0_i32_1 = arith.constant 0 : i32
    return %arg0, %c0_i32, %c0_i32_0 : i32, i32, i32
  }
  func.func @transform_2(%arg0: i32) -> (i32, i32, i32) {
    %c0_i32 = arith.constant 0 : i32
    %c0_i32_0 = arith.constant 0 : i32
    %c0_i32_1 = arith.constant 0 : i32
    return %arg0, %c0_i32, %c0_i32_0 : i32, i32, i32
  }
}

</mosaic_0001>

<llo_original>
// kernel: kernel_shared_tensor_ring.1
$region0: #{kernel_shared_tensor_ring.1}
  #allocation0 [shape = 'u32[]', space=smem, size = 0x4, offset = 0x4, fixed_abs, tag = 'smem constant byte address 0x4 - core index']
  #allocation1 [shape = 'u32[72,128]{1,0:T(1,128)}', space=vmem, size = 0x9000, scoped, tag = 'internal scratch']
  %s0 = inlined_call_operand.vmem [shape: f32[4,8,8], index: 0, kind: input, shape index: {}]
  %s1 = inlined_call_operand.vmem [shape: f32[4,8,8], index: 1, kind: input, shape index: {}]
  %s2 = inlined_call_operand.vmem [shape: f32[4,8,8], index: 2, kind: output, shape index: {}]
  %s3 = sld [smem:[#allocation0]]
  $region41: #{kernel_shared_tensor_ring.1} parent=0
    _
  %s5 = ssub.s32 1, %s3
  %s6 = scalar_select 0, %s5, %s3
  loop: start=0, step=1, limit=6
  $region2: #{kernel_shared_tensor_ring.1} parent=0 // loop_pre_header
    _
  $region3: #{kernel_shared_tensor_ring.1} parent=0 // loop_header
    %s8 = sphi 0, %s12
    %p9 = scmp.ge.s32.totalorder %s8, 6
    %s18 = sphi 0, %s20
    %s21 = sphi 0, %s18
    %s22 = sphi 0, %s21
    %s38 = sphi 0, %s22
    %s44 = sphi 0, %s46
    %s47 = sphi 0, %s44
    %s48 = sphi 0, %s47
    %s64 = sphi 0, %s48
    %s70 = sphi 0, %s72
    %s73 = sphi 0, %s70
    %s74 = sphi 0, %s73
    %s90 = sphi 0, %s74
  $region4: #{kernel_shared_tensor_ring.1} parent=0 // loop_header_branch
    %11 = sbr.rel (%p9) target = $region8
  $region5: #{kernel_shared_tensor_ring.1} parent=0 // loop_body
    %s13 = ssub.s32 %s8, 1
    %s14 = ssub.s32 %s8, 2
    %s15 = sadd.s32 %s8, 1
    %s16 = ssub.s32 %s8, %s15
    %p17 = scmp.eq.s32.totalorder %s16, 0
    %s19 = sadd.s32 %s18, 1
    %s20 = scalar_select %p17, %s18, %s19
    %p23 = pneg %p17
    %p24 = scmp.eq.s32.totalorder %s8, 3
    %p25 = por %p23, %p24
    %p26 = scmp.ne.s32.totalorder %s18, %s21
    %p27 = scmp.eq.s32.totalorder %s8, 0
    %p28 = por %p26, %p27
    %p29 = scmp.ne.s32.totalorder %s18, %s21
    %p30 = scmp.eq.s32.totalorder %s13, 3
    %p31 = por %p29, %p30
    %p32 = scmp.ne.s32.totalorder %s21, %s22
    %p33 = scmp.eq.s32.totalorder %s13, 0
    %p34 = por %p32, %p33
    %p35 = scmp.ne.s32.totalorder %s21, %s22
    %p36 = scmp.eq.s32.totalorder %s14, 3
    %p37 = por %p35, %p36
    %p39 = scmp.ne.s32.totalorder %s22, %s38
    %p40 = scmp.eq.s32.totalorder %s14, 0
    %p41 = por %p39, %p40
    %s42 = ssub.s32 %s8, %s15
    %p43 = scmp.eq.s32.totalorder %s42, 0
    %s45 = sadd.s32 %s44, 1
    %s46 = scalar_select %p43, %s44, %s45
    %p49 = pneg %p43
    %p50 = scmp.eq.s32.totalorder %s8, 3
    %p51 = por %p49, %p50
    %p52 = scmp.ne.s32.totalorder %s44, %s47
    %p53 = scmp.eq.s32.totalorder %s8, 0
    %p54 = por %p52, %p53
    %p55 = scmp.ne.s32.totalorder %s44, %s47
    %p56 = scmp.eq.s32.totalorder %s13, 3
    %p57 = por %p55, %p56
    %p58 = scmp.ne.s32.totalorder %s47, %s48
    %p59 = scmp.eq.s32.totalorder %s13, 0
    %p60 = por %p58, %p59
    %p61 = scmp.ne.s32.totalorder %s47, %s48
    %p62 = scmp.eq.s32.totalorder %s14, 3
    %p63 = por %p61, %p62
    %p65 = scmp.ne.s32.totalorder %s48, %s64
    %p66 = scmp.eq.s32.totalorder %s14, 0
    %p67 = por %p65, %p66
    %s68 = ssub.s32 %s8, %s15
    %p69 = scmp.eq.s32.totalorder %s68, 0
    %s71 = sadd.s32 %s70, 1
    %s72 = scalar_select %p69, %s70, %s71
    %p75 = pneg %p69
    %p76 = scmp.eq.s32.totalorder %s8, 3
    %p77 = por %p75, %p76
    %p78 = scmp.ne.s32.totalorder %s70, %s73
    %p79 = scmp.eq.s32.totalorder %s8, 0
    %p80 = por %p78, %p79
    %p81 = scmp.ne.s32.totalorder %s70, %s73
    %p82 = scmp.eq.s32.totalorder %s13, 3
    %p83 = por %p81, %p82
    %p84 = scmp.ne.s32.totalorder %s73, %s74
    %p85 = scmp.eq.s32.totalorder %s13, 0
    %p86 = por %p84, %p85
    %p87 = scmp.ne.s32.totalorder %s73, %s74
    %p88 = scmp.eq.s32.totalorder %s14, 3
    %p89 = por %p87, %p88
    %p91 = scmp.ne.s32.totalorder %s74, %s90
    %p92 = scmp.eq.s32.totalorder %s14, 0
    %p93 = por %p91, %p92
    %p94 = scmp.le.s32.totalorder 1, %s8
    %p95 = scmp.lt.s32.totalorder %s8, 5
    %p96 = pnand %p94, %p95
    %p97 = pneg %p96
    // Predicated region
    $region9: #{kernel_shared_tensor_ring.1} parent=5 // pred_check
      _
    $region10: #{kernel_shared_tensor_ring.1} parent=5 // pred_check_branch
      %99 = sbr.rel (%p96) target = $region12
    $region11: #{kernel_shared_tensor_ring.1} parent=5 // pred_region
      %s100 = ssub.s32 %s8, 1
    $region12: #{kernel_shared_tensor_ring.1} parent=5 // pred_fallthru
      _
    %p101 = scmp.lt.s32.totalorder %s8, 4
    // Predicated region
    $region13: #{kernel_shared_tensor_ring.1} parent=5 // pred_check
      %p102 = pneg %p101
    $region14: #{kernel_shared_tensor_ring.1} parent=5 // pred_check_branch
      %104 = sbr.rel (%p102) target = $region16
    $region15: #{kernel_shared_tensor_ring.1} parent=5 // pred_region
      // Predicated region
      $region17: #{kernel_shared_tensor_ring.1} parent=15 // pred_check
        %p105 = pneg %p28
      $region18: #{kernel_shared_tensor_ring.1} parent=15 // pred_check_branch
        %107 = sbr.rel (%p105) target = $region20
      $region19: #{kernel_shared_tensor_ring.1} parent=15 // pred_region
        %p108 = scmp.lt.s32.totalorder %s8, 3
        %s109 = scalar_select %p108, %s8, 3
        %s110 = smul.addr %s109, 8
        %s111 = scalar_lea.vmem %s0, %s110
      $region20: #{kernel_shared_tensor_ring.1} parent=15 // pred_fallthru
        _
      // Predicated region
      $region21: #{kernel_shared_tensor_ring.1} parent=15 // pred_check
        %p112 = pneg %p54
      $region22: #{kernel_shared_tensor_ring.1} parent=15 // pred_check_branch
        %114 = sbr.rel (%p112) target = $region24
      $region23: #{kernel_shared_tensor_ring.1} parent=15 // pred_region
        %p115 = scmp.lt.s32.totalorder %s8, 3
        %s116 = scalar_select %p115, %s8, 3
        %s117 = smul.addr %s116, 8
        %s118 = scalar_lea.vmem %s1, %s117
      $region24: #{kernel_shared_tensor_ring.1} parent=15 // pred_fallthru
        _
    $region16: #{kernel_shared_tensor_ring.1} parent=5 // pred_fallthru
      _
    %p119 = scmp.le.s32.totalorder 1, %s8
    %p120 = scmp.lt.s32.totalorder %s8, 5
    %p121 = pnand %p119, %p120
    %p122 = pneg %p121
    // Predicated region
    $region25: #{kernel_shared_tensor_ring.1} parent=5 // pred_check
      _
    $region26: #{kernel_shared_tensor_ring.1} parent=5 // pred_check_branch
      %124 = sbr.rel (%p121) target = $region28
    $region27: #{kernel_shared_tensor_ring.1} parent=5 // pred_region
      %s125 = ssub.s32 %s8, 1
      %p126 = scmp.lt.s32.totalorder %s13, 3
      %s127 = scalar_select %p126, %s13, 3
      %s128 = smul.addr %s127, 8
      %s129 = scalar_lea.vmem %s0, %s128
      %p130 = pneg %p34
      %p131 = pneg %p31
      %p132 = scmp.lt.s32.totalorder %s13, 3
      %s133 = scalar_select %p132, %s13, 3
      %s134 = smul.addr %s133, 8
      %s135 = scalar_lea.vmem %s1, %s134
      %p136 = pneg %p60
      %p137 = pneg %p57
      %p138 = pneg %p86
      %p139 = pneg %p83
      %p140 = scmp.lt.s32.totalorder %s13, 3
      %s141 = scalar_select %p140, %s13, 3
      %s142 = smul.addr %s141, 8
      %s143 = scalar_lea.vmem %s2, %s142
      %p144 = scmp.lt.s32.totalorder %s13, 3
      %s145 = scalar_select %p144, %s13, 3
      %s146 = smul.addr %s145, 8
      %s147 = scalar_lea.vmem %s0, %s146
      %p148 = scmp.lt.s32.totalorder %s13, 3
      %s149 = scalar_select %p148, %s13, 3
      %s150 = smul.addr %s149, 8
      %s151 = scalar_lea.vmem %s1, %s150
      %p152 = scmp.lt.s32.totalorder %s13, 3
      %s153 = scalar_select %p152, %s13, 3
      %s154 = smul.addr %s153, 8
      %s155 = scalar_lea.vmem %s2, %s154
      %v156 = vld [vmem:[%s147] sm:$0xff]
      %v157 = vld [vmem:[%s151] sm:$0xff]
      %vm158 = vcmask 64512
      %v160 = vsel %vm158, %v156, 0
      %162 = vmatpush.msra.mxu0 0.0
      %163 = vmatpush.msra.mxu0 0.0
      %164 = vmatpush.msra.mxu0 0.0
      %165 = vmatpush.msra.mxu0 0.0
      %166 = vmatpush.msra.mxu0 0.0
      %167 = vmatpush.msra.mxu0 0.0
      %168 = vmatpush.msra.mxu0 0.0
      %169 = vmatpush.msra.mxu0 0.0
      %170 = vmatpush.msra.mxu0 0.0
      %171 = vmatpush.msra.mxu0 0.0
      %172 = vmatpush.msra.mxu0 0.0
      %173 = vmatpush.msra.mxu0 0.0
      %174 = vmatpush.msra.mxu0 0.0
      %175 = vmatpush.msra.mxu0 0.0
      %176 = vmatpush.msra.mxu0 0.0
      %177 = vmatpush.msra.mxu0 %v157
      %178 = vmatmul.f32.gmra.mxu0 %v160
      %v179 = vpop.f32.mrf.mxu0
      %v180 = vadd.f32 0.0, %v179
      %181 = vdwg.mxu0
      %182 = vst.msk [vmem:[%s155] sm:$0xff] %vm158, %v180
      %p183 = scmp.lt.s32.totalorder %s13, 3
      %s184 = scalar_select %p183, %s13, 3
      %s185 = smul.addr %s184, 8
      %s186 = scalar_lea.vmem %s2, %s185
      // Predicated region
      $region29: #{kernel_shared_tensor_ring.1} parent=27 // pred_check
        %p187 = pneg %p83
      $region30: #{kernel_shared_tensor_ring.1} parent=27 // pred_check_branch
        %189 = sbr.rel (%p187) target = $region32
      $region31: #{kernel_shared_tensor_ring.1} parent=27 // pred_region
        _
      $region32: #{kernel_shared_tensor_ring.1} parent=27 // pred_fallthru
        _
    $region28: #{kernel_shared_tensor_ring.1} parent=5 // pred_fallthru
      _
    %p190 = scmp.le.s32.totalorder 2, %s8
    // Predicated region
    $region33: #{kernel_shared_tensor_ring.1} parent=5 // pred_check
      %p191 = pneg %p190
    $region34: #{kernel_shared_tensor_ring.1} parent=5 // pred_check_branch
      %193 = sbr.rel (%p191) target = $region36
    $region35: #{kernel_shared_tensor_ring.1} parent=5 // pred_region
      %s194 = ssub.s32 %s8, 2
      // Predicated region
      $region37: #{kernel_shared_tensor_ring.1} parent=35 // pred_check
        %p195 = pneg %p89
      $region38: #{kernel_shared_tensor_ring.1} parent=35 // pred_check_branch
        %197 = sbr.rel (%p195) target = $region40
      $region39: #{kernel_shared_tensor_ring.1} parent=35 // pred_region
        %p198 = scmp.lt.s32.totalorder %s14, 3
        %s199 = scalar_select %p198, %s14, 3
        %s200 = smul.addr %s199, 8
        %s201 = scalar_lea.vmem %s2, %s200
      $region40: #{kernel_shared_tensor_ring.1} parent=35 // pred_fallthru
        _
    $region36: #{kernel_shared_tensor_ring.1} parent=5 // pred_fallthru
      _
  $region6: #{kernel_shared_tensor_ring.1} parent=0 // loop_footer
    %s12 = sadd.s32 1, %s8
  $region7: #{kernel_shared_tensor_ring.1} parent=0 // loop_footer_branch
    %7 = sbr.rel target = $region3
  $region8: #{kernel_shared_tensor_ring.1} parent=0 // loop_exit
    _

</llo_original>
